<compile_context>
chip_gen: v7x
topology: tpu7x:2x2x1
jax: 0.10.0
libtpu: 0.0.40
codegen_flags: <defaults>
</compile_context>

<pallas_src>
import functools

import jax
import jax.numpy as jnp
from jax import lax
from jax.experimental import pallas as pl
from jax.experimental.pallas import tpu as pltpu


# --------------------------------------------------------------------------- #
# Defensive, one-time probe that pins pltpu.roll's rotation direction.
# (Expected: jnp.roll semantics, i.e. out[i] = x[(i - shift) % n].)
# --------------------------------------------------------------------------- #
_ROLL_SIGN = None


def _probe_roll_sign():
    global _ROLL_SIGN
    if _ROLL_SIGN is None:
        def k(x_ref, o_ref):
            o_ref[...] = pltpu.roll(x_ref[...], shift=1, axis=0)

        x = (jnp.arange(8, dtype=jnp.float32).reshape(8, 1)
             * jnp.ones((1, 128), jnp.float32))
        out = pl.pallas_call(
            k, out_shape=jax.ShapeDtypeStruct((8, 128), jnp.float32))(x)
        _ROLL_SIGN = 1 if int(jax.block_until_ready(out)[1, 0]) == 0 else -1
    return _ROLL_SIGN


# --------------------------------------------------------------------------- #
# Kernel
# --------------------------------------------------------------------------- #
def _kernel(B, rows_per, G, Cout, Cy, Wg, Hout, Wout, roll_sign,
            y_ref, w1_ref, b1_ref, w2_ref, b2_ref, fs_ref, ft_ref,
            w3_ref, b3_ref, out_ref):
    """One grid step = B samples in pixel-group layout.

    Layout: each working row holds G consecutive halo-grid pixels; lanes are
    (pixel-in-group, channel).  Shapes:
      y_ref   : (B*rows_per, G*Cy)     space-to-depth input   (f32)
      w*_ref  : (T*G*C, G*Cout)        block-diagonal im2col weights (bf16)
      b*_ref  : (1, G*Cout)            biases tiled across the group (f32)
      fs/ft   : (B, 1, G*Cout)         fused BatchNorm*FiLM scale / shift (f32)
      out_ref : (B*rows_per, G*Cout)   lane-dense output slab (f32)
    """
    f32 = jnp.float32
    bf16 = jnp.bfloat16
    GCo = G * Cout
    M = B * rows_per

    def rot(x, s, axis):
        # out[i] = x[(i + s) % n] along `axis` (sign convention pinned by probe).
        n = x.shape[axis]
        amt = (-roll_sign * s) % n
        if amt == 0:
            return x
        return pltpu.roll(x, shift=amt, axis=axis)

    def lane_shift(x, a):
        # out[:, l] = x[:, (l + a) % width]; emitted as per-128-lane-chunk
        # rotations + selects so only single-vreg lane rotations are generated.
        width = x.shape[1]
        a = a % width
        if a == 0:
            return x
        if width <= 128 or width % 128 != 0:
            return rot(x, a, 1)
        k = width // 128
        q, r = divmod(a, 128)
        chunks = [x[:, i * 128:(i + 1) * 128] for i in range(k)]
        if r == 0:
            return jnp.concatenate([chunks[(j + q) % k] for j in range(k)], axis=1)
        lane = lax.broadcasted_iota(jnp.int32, (x.shape[0], 128), 1)
        sel = lane < (128 - r)
        rchunks = [rot(c, r, 1) for c in chunks]
        out = [jnp.where(sel, rchunks[(j + q) % k], rchunks[(j + q + 1) % k])
               for j in range(k)]
        return jnp.concatenate(out, axis=1)

    def shift_pixels(x, s, C, gidx):
        # Group-layout pixel shift: out[pixel p] = x[pixel p + s].
        # Exact for every pixel whose source stays inside this block; interior
        # output pixels only ever read inside their own sample's halo grid, so
        # roll wrap-around only lands on masked halo / alignment-pad pixels.
        sm = s % G                      # static Python ints
        q0 = (s - sm) // G
        base = rot(x, q0, 0)
        if sm == 0:
            return base
        y1 = lane_shift(base, sm * C)
        y2 = rot(y1, 1, 0)
        return jnp.where(gidx < G - sm, y1, y2)

    # Lane -> pixel-within-group index for the two channel widths in use.
    gidx_in = lax.broadcasted_iota(jnp.int32, (M, G * Cy), 1) // Cy
    gidx_out = lax.broadcasted_iota(jnp.int32, (M, GCo), 1) // Cout

    # Interior-pixel mask (1.0 on real output pixels, 0.0 on halo / pad),
    # generated in-kernel (no DMA'd mask stream).
    row = lax.broadcasted_iota(jnp.int32, (M, GCo), 0)
    pix = (row % rows_per) * G + gidx_out
    hh, ww = pix // Wg, pix % Wg
    mask = ((hh >= 1) & (hh <= Hout) & (ww >= 1) & (ww <= Wout)).astype(f32)

    # ---- operate1: Conv2d(3x3, stride 2, pad 1) + ReLU ----------------------
    # == 2x2 stride-1 conv over the space-to-depth input: one bf16 matmul.
    y = y_ref[...]
    im1 = jnp.concatenate(
        [shift_pixels(y, qh * Wg + qw, Cy, gidx_in)
         for qh in (0, 1) for qw in (0, 1)], axis=1).astype(bf16)
    x2 = jnp.dot(im1, w1_ref[...], preferred_element_type=f32) + b1_ref[...]
    x2 = jnp.maximum(x2, 0.0) * mask                 # ReLU + zero halo/pad pixels

    def conv3x3(x, w_ref, b_ref):
        im = jnp.concatenate(
            [shift_pixels(x, dh * Wg + dw, Cout, gidx_out)
             for dh in (-1, 0, 1) for dw in (-1, 0, 1)], axis=1).astype(bf16)
        return jnp.dot(im, w_ref[...], preferred_element_type=f32) + b_ref[...]

    # ---- operate2: Conv + LeakyReLU + (BN(eval) . FiLM) folded affine -------
    h = conv3x3(x2, w2_ref, b2_ref)
    h = jnp.where(h > 0, h, 0.01 * h)
    if B == 1:
        h = h * fs_ref[0] + ft_ref[0]
    else:  # rows_per is a multiple of 8, so this leading-dim reshape is free.
        h = (h.reshape(B, rows_per, GCo) * fs_ref[...] + ft_ref[...]).reshape(M, GCo)
    h = h * mask                                     # zero halo for the last conv

    # ---- last_conv + residual ------------------------------------------------
    out_ref[...] = x2 + conv3x3(h, w3_ref, b3_ref)


# --------------------------------------------------------------------------- #
# Wrapper
# --------------------------------------------------------------------------- #
@functools.partial(jax.jit, static_argnums=(3,))
def _forward(x_nchw, lambda_, params, roll_sign):
    f32, bf16 = jnp.float32, jnp.bfloat16
    N, Cin, H, W = x_nchw.shape
    Cout = params["b1"].shape[0]
    Hout = (H - 1) // 2 + 1
    Wout = (W - 1) // 2 + 1
    Hg, Wg = Hout + 2, Wout + 2                       # output grid + 1-px zero halo
    HWg = Hg * Wg
    Cy = 4 * Cin                                      # space-to-depth channels

    # Pixel-group layout: G consecutive halo-grid pixels per row -> lane-dense.
    G = 128 // Cout if 128 % Cout == 0 else 1
    HWgp = -(-HWg // (8 * G)) * (8 * G)               # per-sample pixels, aligned
    rows_per = HWgp // G                              # group-rows / sample (mult of 8)

    # Interior conv reads must stay inside the sample's own halo grid so that
    # roll wrap-around / cross-sample bleed only lands on masked pixels.
    max_shift = Wg + 1
    assert Hout * Wg + Wout + max_shift < HWg, "conv taps escape the halo grid"
    assert (Wg + 1) - max_shift >= 0, "conv taps escape the halo grid"
    assert HWgp % G == 0 and rows_per % 8 == 0

    # ---- samples per grid step from a VMEM budget + >=4-step pipeline target --
    per_sample_bytes = rows_per * (
        2 * G * Cy * 4 + 2 * G * Cout * 4             # double-buffered in/out blocks
        + 4 * G * Cy * 2 + 2 * 9 * G * Cout * 2       # bf16 im2col slabs
        + 6 * G * Cout * 4)                           # f32 temporaries (x2/h/mask/..)
    b_mem = max(1, (20 << 20) // per_sample_bytes)
    target_steps = 4 if N >= 4 else max(1, N)
    B = max(1, min(b_mem, N // target_steps, N))
    steps = -(-N // B)
    N_pad = steps * B                                 # pad batch: no B=1 collapse

    # ---- input: one combined pad makes conv padding + halo; one transpose ----
    x = x_nchw.astype(f32)
    xp = jnp.pad(x, ((0, N_pad - N), (0, 0),
                     (3, 2 * Hg - 3 - H), (3, 2 * Wg - 3 - W)))
    y = xp.reshape(N_pad, Cin, Hg, 2, Wg, 2)
    y = jnp.transpose(y, (0, 2, 4, 3, 5, 1)).reshape(N_pad, HWg, Cy)
    y = jnp.pad(y, ((0, 0), (0, HWgp - HWg), (0, 0)))
    y2d = y.reshape(N_pad * rows_per, G * Cy)         # group layout, lane-dense

    # ---- weights: per-tap -> block-diagonal (T*G*C, G*Cout), bf16 -------------
    def blockdiag(w_flat, T, C):
        w_t = w_flat.reshape(T, C, Cout)
        eye = jnp.eye(G, dtype=f32)
        big = jnp.einsum('tcd,gh->tgchd', w_t, eye)
        return big.reshape(T * G * C, G * Cout).astype(bf16)

    w1p = jnp.pad(params["w1"].astype(f32), ((0, 0), (0, 0), (0, 1), (0, 1)))
    w1p = w1p.reshape(Cout, Cin, 2, 2, 2, 2)          # co, ci, qh, ph, qw, pw
    w1e = jnp.transpose(w1p, (2, 4, 3, 5, 1, 0)).reshape(4 * Cy, Cout)

    def w_s1(w):                                      # (Cout,C,3,3) -> (9*C, Cout)
        return jnp.transpose(w.astype(f32), (2, 3, 1, 0)).reshape(9 * w.shape[1], Cout)

    w1b = blockdiag(w1e, 4, Cy)
    w2b = blockdiag(w_s1(params["w2"]), 9, Cout)
    w3b = blockdiag(w_s1(params["w3"]), 9, Cout)

    def lane_tile(v):                                 # (Cout,) -> (1, G*Cout)
        return jnp.tile(v.astype(f32).reshape(1, Cout), (1, G))

    b1t, b2t, b3t = (lane_tile(params[k]) for k in ("b1", "b2", "b3"))

    # ---- FiLM(Linear L->2*Cout) + eval-mode BN folded per-sample affine ------
    lam = jnp.pad(lambda_.astype(f32), ((0, N_pad - N), (0, 0)))
    gb = lam @ params["wf"].astype(f32) + params["bf"].astype(f32)
    gamma, beta = gb[:, :Cout], gb[:, Cout:]
    bn_scale = params["bn_gamma"] * lax.rsqrt(params["bn_var"] + 1e-5)
    bn_shift = params["bn_beta"] - params["bn_mean"] * bn_scale
    fs = jnp.tile(gamma * bn_scale[None, :], (1, G)).reshape(N_pad, 1, G * Cout)
    ft = jnp.tile(gamma * bn_shift[None, :] + beta, (1, G)).reshape(N_pad, 1, G * Cout)

    kernel = functools.partial(_kernel, B, rows_per, G, Cout, Cy, Wg, Hout, Wout,
                               roll_sign)

    M = B * rows_per
    GCo = G * Cout
    grid_spec = pltpu.PrefetchScalarGridSpec(
        num_scalar_prefetch=0,
        grid=(N_pad // B,),
        in_specs=[
            pl.BlockSpec((M, G * Cy), lambda n: (n, 0)),        # activations
            pl.BlockSpec((4 * G * Cy, GCo), lambda n: (0, 0)),  # conv1 weight
            pl.BlockSpec((1, GCo), lambda n: (0, 0)),           # conv1 bias
            pl.BlockSpec((9 * GCo, GCo), lambda n: (0, 0)),     # conv2 weight
            pl.BlockSpec((1, GCo), lambda n: (0, 0)),           # conv2 bias
            pl.BlockSpec((B, 1, GCo), lambda n: (n, 0, 0)),     # BN*FiLM scale
            pl.BlockSpec((B, 1, GCo), lambda n: (n, 0, 0)),     # BN*FiLM shift
            pl.BlockSpec((9 * GCo, GCo), lambda n: (0, 0)),     # conv3 weight
            pl.BlockSpec((1, GCo), lambda n: (0, 0)),           # conv3 bias
        ],
        out_specs=pl.BlockSpec((M, GCo), lambda n: (n, 0)),
    )

    flops = 2 * N_pad * rows_per * GCo * (4 * G * Cy + 18 * G * Cout)
    bytes_acc = ((y2d.size + N_pad * rows_per * GCo) * 4
                 + (w1b.size + w2b.size + w3b.size) * 2
                 + (fs.size + ft.size) * 4)
    cost = pl.CostEstimate(flops=int(flops), transcendentals=0,
                           bytes_accessed=int(bytes_acc))

    out2d = pl.pallas_call(
        kernel,
        out_shape=jax.ShapeDtypeStruct((N_pad * rows_per, GCo), f32),
        grid_spec=grid_spec,
        compiler_params=pltpu.CompilerParams(
            dimension_semantics=("parallel",),
            vmem_limit_bytes=48 * 1024 * 1024),
        cost_estimate=cost,
    )(y2d, w1b, b1t, w2b, b2t, fs, ft, w3b, b3t)

    out = out2d.reshape(N_pad, HWgp, Cout)[:N, :HWg]
    out = out.reshape(N, Hg, Wg, Cout)[:, 1:Hout + 1, 1:Wout + 1, :]
    return jnp.transpose(out, (0, 3, 1, 2))           # back to NCHW


def residual_conv2d_film(x_nchw, lambda_, params):
    return _forward(x_nchw, lambda_, params, _probe_roll_sign())


# --------------------------------------------------------------------------- #
# Pure-JAX reference (lax.conv with bf16 operands / f32 accumulation so it
# matches the kernel's MXU precision), used only to validate the kernel.
# --------------------------------------------------------------------------- #
def reference_forward(x_nchw, lambda_, params):
    f32, bf16 = jnp.float32, jnp.bfloat16
    dn = ("NHWC", "HWIO", "NHWC")
    C = params["b1"].shape[0]
    x = jnp.transpose(x_nchw, (0, 2, 3, 1)).astype(f32)

    def conv(x, w, b, stride):
        w_hwio = jnp.transpose(w, (2, 3, 1, 0)).astype(bf16)
        y = lax.conv_general_dilated(x.astype(bf16), w_hwio, (stride, stride),
                                     ((1, 1), (1, 1)), dimension_numbers=dn,
                                     preferred_element_type=f32)
        return y + b.astype(f32)

    x2 = jnp.maximum(conv(x, params["w1"], params["b1"], 2), 0.0)
    y = conv(x2, params["w2"], params["b2"], 1)
    y = jnp.where(y > 0, y, 0.01 * y)
    y = ((y - params["bn_mean"]) * lax.rsqrt(params["bn_var"] + 1e-5)
         * params["bn_gamma"] + params["bn_beta"])
    gb = lambda_.astype(f32) @ params["wf"] + params["bf"]
    gamma = gb[:, :C][:, None, None, :]
    beta = gb[:, C:][:, None, None, :]
    y = y * gamma + beta
    y = conv(y, params["w3"], params["b3"], 1)
    out = x2 + y
    return jnp.transpose(out, (0, 3, 1, 2))


def init_params(key, Cin, Cout, L):
    ks = jax.random.split(key, 12)
    return dict(
        w1=0.1 * jax.random.normal(ks[0], (Cout, Cin, 3, 3), jnp.float32),
        b1=0.1 * jax.random.normal(ks[1], (Cout,), jnp.float32),
        w2=0.1 * jax.random.normal(ks[2], (Cout, Cout, 3, 3), jnp.float32),
        b2=0.1 * jax.random.normal(ks[3], (Cout,), jnp.float32),
        bn_gamma=1.0 + 0.1 * jax.random.normal(ks[4], (Cout,), jnp.float32),
        bn_beta=0.1 * jax.random.normal(ks[5], (Cout,), jnp.float32),
        bn_mean=0.1 * jax.random.normal(ks[6], (Cout,), jnp.float32),
        bn_var=0.9 + 0.2 * jax.random.uniform(ks[7], (Cout,), jnp.float32),
        wf=0.1 * jax.random.normal(ks[8], (L, 2 * Cout), jnp.float32),
        bf=0.1 * jax.random.normal(ks[9], (2 * Cout,), jnp.float32),
        w3=0.1 * jax.random.normal(ks[10], (Cout, Cout, 3, 3), jnp.float32),
        b3=0.1 * jax.random.normal(ks[11], (Cout,), jnp.float32),
    )


if __name__ == "__main__":
    N, Cin, Cout, H, W, L = 4, 4, 8, 16, 16, 2
    key = jax.random.PRNGKey(0)
    kx, kl, kp = jax.random.split(key, 3)
    x1 = jax.random.normal(kx, (N, Cin, H, W), jnp.float32)
    lambda_ = jax.random.normal(kl, (N, L), jnp.float32)
    params = init_params(kp, Cin, Cout, L)

    y = jax.block_until_ready(residual_conv2d_film(x1, lambda_, params))

    y_ref = reference_forward(x1, lambda_, params)
    assert y.shape == (N, Cout, H // 2, W // 2), y.shape
    max_err = float(jnp.max(jnp.abs(y - y_ref)))
    # bf16 matmul inputs / f32 accumulation in both kernel and reference.
    assert max_err < 2e-3, max_err
    print("KERNEL_OK")
</pallas_src>

<mosaic_0001>
module attributes {stable_mosaic.version = 11 : i64} {
  func.func @k(%arg0: memref<8x128xf32, #tpu.memory_space<vmem>>, %arg1: memref<8x128xf32, #tpu.memory_space<vmem>>) attributes {dimension_semantics = [], scalar_prefetch = 0 : i64, scratch_operands = 0 : i64, tpu.core_type = #tpu.core_type<tc>} {
    %c0 = arith.constant 0 : index
    %c0_0 = arith.constant 0 : index
    %0 = vector.load %arg0[%c0, %c0_0] : memref<8x128xf32, #tpu.memory_space<vmem>>, vector<8x128xf32>
    %c1_i32 = arith.constant 1 : i32
    %1 = tpu.dynamic_rotate %0 by %c1_i32 dim 0 : vector<8x128xf32>, i32 -> vector<8x128xf32>
    %c0_1 = arith.constant 0 : index
    %c0_2 = arith.constant 0 : index
    %2 = vector.load %arg1[%c0_1, %c0_2] : memref<8x128xf32, #tpu.memory_space<vmem>>, vector<8x128xf32>
    tpu.vector_store %arg1[%c0_1, %c0_2], %1 {strides = array<i32>} : memref<8x128xf32, #tpu.memory_space<vmem>>, vector<8x128xf32>,
    return
  }
}

</mosaic_0001>

<llo_original>
// kernel: tpu_custom_call.1
$region0: #{tpu_custom_call.1}
  #allocation0 [shape = 'u32[]', space=smem, size = 0x4, offset = 0x4, fixed_abs, tag = 'smem constant byte address 0x4 - core index']
  #allocation1 [shape = 'u32[144,128]{1,0:T(1,128)}', space=vmem, size = 0x12000, scoped, tag = 'internal scratch']
  %s0 = inlined_call_operand.hbm [shape: f32[8,128], index: 0, kind: input, shape index: {}]
  %s1 = inlined_call_operand.hbm [shape: f32[8,128], index: 1, kind: output, shape index: {}]
  %s2 = sld [smem:[#allocation0]]
  $region18: #{tpu_custom_call.1} parent=0
    _
  %s4 = ssub.s32 1, %s2
  %s5 = scalar_select 0, %s4, %s2
  $region1: #{tpu_custom_call.1} parent=0
    #allocation2 [shape = 'u8[4096]{0}', space=vmem, size = 0x1000, scoped, tag = 'input window, operand 0, single buffered']
    #allocation3 [shape = 's32[1]{0}', space=sflag, size = 0x4, scoped, tag = 'scoped memory for tpu_custom_call.1']
    #allocation4 [shape = 's32[1]{0}', space=sflag, size = 0x4, scoped, tag = 'scoped memory for tpu_custom_call.1']
    #allocation5 [shape = 'u8[4096]{0}', space=vmem, size = 0x1000, scoped, tag = 'output window, operand 0, single buffered']
    %6 = vsyncpa [#allocation3], 0
    %7 = vsyncpa [#allocation4], 0
    // Predicated region
    $region2: #{tpu_custom_call.1} parent=1 // pred_check
      _
    $region3: #{tpu_custom_call.1} parent=1 // pred_check_branch
      %9 = sbr.rel (0) target = $region5
    $region4: #{tpu_custom_call.1} parent=1 // pred_region
      %s11 = ssub.s32 128, 128
      %12 = vsyncadd [#allocation3], %s11
      %s14 = sshll.u32 [#allocation2], 4
      %s15 = int_to_ptr.vmem [resolvable:$true] %s14
      %17 = dma.hbm_to_vmem [thread:$0]  %s0, 128, %s15, [#allocation3]
    $region5: #{tpu_custom_call.1} parent=1 // pred_fallthru
      _
    // Predicated region
    $region6: #{tpu_custom_call.1} parent=1 // pred_check
      _
    $region7: #{tpu_custom_call.1} parent=1 // pred_check_branch
      %19 = sbr.rel (0) target = $region9
    $region8: #{tpu_custom_call.1} parent=1 // pred_region
      %20 = dma.done [#allocation3], 128
    $region9: #{tpu_custom_call.1} parent=1 // pred_fallthru
      _
    %v21 = vld [vmem:[#allocation2] sm:$0xff]
    %v22 = vrot.slane %v21, 7
    %23 = vst [vmem:[#allocation5] sm:$0xff] %v22
    // Predicated region
    $region10: #{tpu_custom_call.1} parent=1 // pred_check
      _
    $region11: #{tpu_custom_call.1} parent=1 // pred_check_branch
      %25 = sbr.rel (0) target = $region13
    $region12: #{tpu_custom_call.1} parent=1 // pred_region
      %s27 = ssub.s32 128, 128
      %28 = vsyncadd [#allocation4], %s27
      %s30 = sshll.u32 [#allocation5], 4
      %s31 = int_to_ptr.vmem [resolvable:$true] %s30
      %33 = dma.vmem_to_hbm [thread:$0]  %s31, 128, %s1, [#allocation4]
    $region13: #{tpu_custom_call.1} parent=1 // pred_fallthru
      _
    // Predicated region
    $region14: #{tpu_custom_call.1} parent=1 // pred_check
      _
    $region15: #{tpu_custom_call.1} parent=1 // pred_check_branch
      %35 = sbr.rel (0) target = $region17
    $region16: #{tpu_custom_call.1} parent=1 // pred_region
      %36 = dma.done [#allocation4], 128
    $region17: #{tpu_custom_call.1} parent=1 // pred_fallthru
      _
    %37 = vsyncpa [#allocation3], 1
    %38 = vsyncpa [#allocation4], 1

</llo_original>
